<compile_context>
chip_gen: v5e
topology: v5e:2x2
jax: 0.10.0
libtpu: 0.0.40
codegen_flags: <defaults>
</compile_context>

<pallas_src>
import functools

import jax
import jax.numpy as jnp
from jax.experimental import pallas as pl
from jax.experimental.pallas import tpu as pltpu

_HW_FULL = 16384                       # max spatial slab reduced per grid step
_TILE_TARGET_BYTES = 4 * 1024 * 1024   # ~4 MiB tiles (8 MiB double-buffered)


def _round_up(x, m):
    return ((x + m - 1) // m) * m


def _gap_kernel(x_ref, o_ref, acc_ref, *, hw, tile_hw, mask_hw):
    """Fold one (TILE_BC, TILE_HW) tile into a (TILE_BC, 128) f32 accumulator."""
    k = pl.program_id(1)                  # reduction step over the h*w axis
    last = pl.num_programs(1) - 1
    nchunks = tile_hw // 128              # tile_hw is always a multiple of 128

    @pl.when(k == 0)
    def _init():
        acc_ref[...] = jnp.zeros_like(acc_ref)

    x = x_ref[...].astype(jnp.float32)    # (TILE_BC, TILE_HW)

    def accumulate(xv):
        # Pairwise-tree VPU reduction over 128-lane chunks (static, 128-aligned
        # slices -> no relayout), then one read-modify-write of the accumulator.
        chunks = [xv[:, j * 128:(j + 1) * 128] for j in range(nchunks)]
        while len(chunks) > 1:
            nxt = [a + b for a, b in zip(chunks[0::2], chunks[1::2])]
            if len(chunks) % 2:
                nxt.append(chunks[-1])
            chunks = nxt
        acc_ref[...] += chunks[0]

    if mask_hw:
        # Only the final reduction step can contain out-of-bounds columns;
        # keep earlier steps on the unmasked hot path. Both branches accumulate.
        @pl.when(k != last)
        def _unmasked():
            accumulate(x)

        @pl.when(k == last)
        def _masked():
            col = jax.lax.broadcasted_iota(jnp.int32, x.shape, 1)
            accumulate(jnp.where(k * tile_hw + col < hw, x, 0.0))
    else:
        accumulate(x)

    @pl.when(k == last)
    def _finalize():
        # One tiny lane-dense matvec per row tile: ones(1,128) . acc^T -> (1, TILE_BC).
        # HIGHEST keeps ~f32 accuracy; runs once per tile so its cost is noise.
        ones_row = jnp.ones((1, 128), dtype=jnp.float32)
        row_sums = jax.lax.dot_general(
            ones_row, acc_ref[...],
            dimension_numbers=(((1,), (1,)), ((), ())),
            preferred_element_type=jnp.float32,
            precision=jax.lax.Precision.HIGHEST)
        inv_hw = jnp.float32(1.0 / hw)      # constant-folded at trace time
        o_ref[...] = (row_sums * inv_hw).astype(o_ref.dtype)


def _choose_tiles(bc, hw, itemsize):
    """Pick (tile_bc, tile_hw): fewest 128-aligned spatial steps, ~4 MiB tiles."""
    # Spatial tile: minimal number of steps, rounded to 128 lanes. For clean
    # sizes (e.g. hw=9216) this yields a single unmasked step.
    n_steps = -(-hw // _HW_FULL)
    tile_hw = _round_up(-(-hw // n_steps), 128)

    # Row (b*c) tile from the ~4 MiB budget.
    tile_bc = max(1, _TILE_TARGET_BYTES // (tile_hw * itemsize))
    if bc >= 256:
        # Guarantee >= 2 row tiles so both v7x TensorCores get work on the
        # "parallel" axis (megacore only splits axes with >= 2 blocks).
        tile_bc = min(tile_bc, max(128, (bc // 2) // 128 * 128))
    if tile_bc >= bc:
        tile_bc = bc            # single row tile: full-extent block is legal
    else:
        # Multiple row tiles: multiple of 128 keeps the input block (8,128)-
        # friendly AND the (1, TILE_BC) output block lane-dense.
        tile_bc = max(128, tile_bc // 128 * 128)
    return tile_bc, tile_hw


def global_average_pool(x):
    """x: (b, c, h, w) NCHW -> (b, c) global spatial mean (AdaptiveAvgPool2d(1))."""
    b, c, h, w = x.shape
    bc, hw = b * c, h * w

    if hw < 128:
        # Tiny spatial maps (7x7, ...): a (bc, hw) view uses <hw/128 of every
        # vreg lane and DMA row, so XLA's fused reduce is the faster path.
        return jnp.mean(x, axis=(2, 3), dtype=jnp.float32).astype(x.dtype)

    xf = x.reshape(bc, hw)  # each row is one (b, c) spatial map

    tile_bc, tile_hw = _choose_tiles(bc, hw, jnp.dtype(x.dtype).itemsize)
    num_bc = pl.cdiv(bc, tile_bc)
    num_hw = pl.cdiv(hw, tile_hw)
    bc_pad = num_bc * tile_bc
    mask_hw = (hw % tile_hw != 0)

    kernel = functools.partial(
        _gap_kernel, hw=hw, tile_hw=tile_hw, mask_hw=mask_hw)

    out = pl.pallas_call(
        kernel,
        out_shape=jax.ShapeDtypeStruct((1, bc_pad), x.dtype),
        grid_spec=pltpu.PrefetchScalarGridSpec(
            num_scalar_prefetch=0,
            grid=(num_bc, num_hw),  # reduction (spatial) axis last
            in_specs=[pl.BlockSpec((tile_bc, tile_hw), lambda i, k: (i, k))],
            out_specs=pl.BlockSpec((1, tile_bc), lambda i, k: (0, i)),
            scratch_shapes=[pltpu.VMEM((tile_bc, 128), jnp.float32)],
        ),
        compiler_params=pltpu.CompilerParams(
            dimension_semantics=("parallel", "arbitrary"),
            vmem_limit_bytes=32 * 1024 * 1024),
    )(xf)

    # Slice off padded columns produced by a partial last row-tile.
    return out[0, :bc].reshape(b, c)


if __name__ == "__main__":
    key = jax.random.PRNGKey(0)

    shapes = [
        (2, 4, 16, 16),     # small spec shape: single-tile path
        (2, 512, 32, 32),   # >=2 B*C row-tiles (parallel axis / megacore)
        (2, 8, 96, 96),     # hw=9216: one clean unmasked spatial step
        (2, 4, 18, 18),     # hw=324: padded spatial block + masked last step
        (2, 8, 100, 170),   # hw=17000: multi-step reduction + masked tail
        (2, 300, 16, 16),   # bc=600: partial last bc tile (padded cols sliced)
        (2, 64, 7, 7),      # hw=49 < 128: XLA fused-reduce fallback path
    ]
    for idx, shape in enumerate(shapes):
        x = jax.random.normal(jax.random.fold_in(key, idx), shape,
                              dtype=jnp.float32)
        y = global_average_pool(x)
        jax.block_until_ready(y)
        ref = jnp.mean(x, axis=(2, 3))
        assert y.shape == shape[:2], (y.shape, shape)
        assert jnp.allclose(y, ref, atol=1e-5, rtol=1e-5), (
            shape, float(jnp.max(jnp.abs(y - ref))))

    print("KERNEL_OK")
</pallas_src>

<mosaic_0001>
module attributes {stable_mosaic.version = 11 : i64} {
  func.func @_gap_kernel(%arg0: i32, %arg1: i32, %arg2: memref<8x256xf32, #tpu.memory_space<vmem>>, %arg3: memref<1x8xf32, #tpu.memory_space<vmem>>, %arg4: memref<8x128xf32, #tpu.memory_space<vmem>>) attributes {dimension_semantics = [#tpu.dimension_semantics<parallel>, #tpu.dimension_semantics<arbitrary>], iteration_bounds = array<i64: 1, 1>, scalar_prefetch = 0 : i64, scratch_operands = 1 : i64, tpu.core_type = #tpu.core_type<tc>, window_params = [{transform_indices = @transform_0, window_bounds = array<i64: 8, 256>}, {transform_indices = @transform_1, window_bounds = array<i64: 1, 8>}]} {
    %c0_i32 = arith.constant 0 : i32
    %0 = arith.cmpi eq, %arg1, %c0_i32 : i32
    %1 = arith.extui %0 : i1 to i32
    %c0_i32_0 = arith.constant 0 : i32
    %2 = arith.cmpi ne, %1, %c0_i32_0 : i32
    scf.if %2 {
      %cst = arith.constant 0.000000e+00 : f32
      %13 = vector.broadcast %cst : f32 to vector<8x128xf32>
      %c0_8 = arith.constant 0 : index
      %c0_9 = arith.constant 0 : index
      %14 = vector.load %arg4[%c0_8, %c0_9] : memref<8x128xf32, #tpu.memory_space<vmem>>, vector<8x128xf32>
      tpu.vector_store %arg4[%c0_8, %c0_9], %13 {strides = array<i32>} : memref<8x128xf32, #tpu.memory_space<vmem>>, vector<8x128xf32>,
    } else {
    }
    %c0 = arith.constant 0 : index
    %c0_1 = arith.constant 0 : index
    %3 = vector.load %arg2[%c0, %c0_1] : memref<8x256xf32, #tpu.memory_space<vmem>>, vector<8x256xf32>
    %4 = vector.extract_strided_slice %3 {offsets = [0, 0], sizes = [8, 128], strides = [1, 1]} : vector<8x256xf32> to vector<8x128xf32>
    %5 = vector.extract_strided_slice %3 {offsets = [0, 128], sizes = [8, 128], strides = [1, 1]} : vector<8x256xf32> to vector<8x128xf32>
    %6 = arith.addf %4, %5 : vector<8x128xf32>
    %c0_2 = arith.constant 0 : index
    %c0_3 = arith.constant 0 : index
    %7 = vector.load %arg4[%c0_2, %c0_3] : memref<8x128xf32, #tpu.memory_space<vmem>>, vector<8x128xf32>
    %8 = arith.addf %7, %6 : vector<8x128xf32>
    %c0_4 = arith.constant 0 : index
    %c0_5 = arith.constant 0 : index
    %9 = vector.load %arg4[%c0_4, %c0_5] : memref<8x128xf32, #tpu.memory_space<vmem>>, vector<8x128xf32>
    tpu.vector_store %arg4[%c0_4, %c0_5], %8 {strides = array<i32>} : memref<8x128xf32, #tpu.memory_space<vmem>>, vector<8x128xf32>,
    %c0_i32_6 = arith.constant 0 : i32
    %10 = arith.cmpi eq, %arg1, %c0_i32_6 : i32
    %11 = arith.extui %10 : i1 to i32
    %c0_i32_7 = arith.constant 0 : i32
    %12 = arith.cmpi ne, %11, %c0_i32_7 : i32
    scf.if %12 {
      %cst = arith.constant 1.000000e+00 : f32
      %13 = vector.broadcast %cst : f32 to vector<1x128xf32>
      %c0_8 = arith.constant 0 : index
      %c0_9 = arith.constant 0 : index
      %14 = vector.load %arg4[%c0_8, %c0_9] : memref<8x128xf32, #tpu.memory_space<vmem>>, vector<8x128xf32>
      %cst_10 = arith.constant dense<0.000000e+00> : vector<1x8xf32>
      %15 = tpu.matmul %13, %14, %cst_10 {dimension_numbers = #tpu.dot_dimension_numbers<[1], [1], [0], [0], [0, 0, 1, 0], [], []>, precision = #tpu.contract_precision<fp32>} : vector<1x128xf32>, vector<8x128xf32>, vector<1x8xf32> -> vector<1x8xf32>
      %cst_11 = arith.constant 3.906250e-03 : f32
      %16 = vector.broadcast %cst_11 : f32 to vector<1x8xf32>
      %17 = arith.mulf %15, %16 : vector<1x8xf32>
      %c0_12 = arith.constant 0 : index
      %c0_13 = arith.constant 0 : index
      %18 = vector.load %arg3[%c0_12, %c0_13] : memref<1x8xf32, #tpu.memory_space<vmem>>, vector<1x8xf32>
      tpu.vector_store %arg3[%c0_12, %c0_13], %17 {strides = array<i32>} : memref<1x8xf32, #tpu.memory_space<vmem>>, vector<1x8xf32>,
    } else {
    }
    return
  }
  func.func @transform_0(%arg0: i32, %arg1: i32) -> (i32, i32) {
    %c0_i32 = arith.constant 0 : i32
    return %arg0, %arg1 : i32, i32
  }
  func.func @transform_1(%arg0: i32, %arg1: i32) -> (i32, i32) {
    %c0_i32 = arith.constant 0 : i32
    %c0_i32_0 = arith.constant 0 : i32
    return %c0_i32, %arg0 : i32, i32
  }
}

</mosaic_0001>

<llo_original>
// kernel: tpu_custom_call.1
$region0: #{tpu_custom_call.1}
  #allocation0 [shape = 'u32[]', space=smem, size = 0x4, offset = 0x4, fixed_abs, tag = 'smem constant byte address 0x4 - core index']
  #allocation1 [shape = 'u32[72,128]{1,0:T(1,128)}', space=vmem, size = 0x9000, scoped, tag = 'internal scratch']
  #allocation2 [shape = 'f32[8,128]{1,0:T(8,128)}', space=vmem, size = 0x1000, scoped, tag = 'scratch operand']
  %s0 = inlined_call_operand.hbm [shape: f32[8,256], index: 0, kind: input, shape index: {}]
  %s1 = inlined_call_operand.hbm [shape: f32[1,8], index: 1, kind: output, shape index: {}]
  %s2 = sld [smem:[#allocation0]]
  $region26: #{tpu_custom_call.1} parent=0
    _
  %s4 = ssub.s32 1, %s2
  %s5 = scalar_select 0, %s4, %s2
  $region1: #{tpu_custom_call.1} parent=0
    #allocation3 [shape = 'u8[8192]{0}', space=vmem, size = 0x2000, scoped, tag = 'input window, operand 0, single buffered']
    #allocation4 [shape = 's32[1]{0}', space=sflag, size = 0x4, scoped, tag = 'scoped memory for tpu_custom_call.1']
    #allocation5 [shape = 's32[1]{0}', space=sflag, size = 0x4, scoped, tag = 'scoped memory for tpu_custom_call.1']
    #allocation6 [shape = 'u8[512]{0}', space=vmem, size = 0x400, scoped, tag = 'output window, operand 0, single buffered']
    %6 = vsyncpa [#allocation4], 0
    %7 = vsyncpa [#allocation5], 0
    // Predicated region
    $region2: #{tpu_custom_call.1} parent=1 // pred_check
      _
    $region3: #{tpu_custom_call.1} parent=1 // pred_check_branch
      %9 = sbr.rel (0) target = $region5
    $region4: #{tpu_custom_call.1} parent=1 // pred_region
      %11 = vsyncadd [#allocation4], 0
      %s13 = sshll.u32 %s0, 4
      %s14 = int_to_ptr.hbm [resolvable:$true] %s13
      %s15 = sshll.u32 [#allocation3], 4
      %s16 = int_to_ptr.vmem [resolvable:$true] %s15
      %18 = dma.hbm_to_vmem [thread:$0]  %s14, 256, %s16, [#allocation4]
    $region5: #{tpu_custom_call.1} parent=1 // pred_fallthru
      _
    // Predicated region
    $region6: #{tpu_custom_call.1} parent=1 // pred_check
      _
    $region7: #{tpu_custom_call.1} parent=1 // pred_check_branch
      %20 = sbr.rel (0) target = $region9
    $region8: #{tpu_custom_call.1} parent=1 // pred_region
      %22 = dma.done [#allocation4], 256
    $region9: #{tpu_custom_call.1} parent=1 // pred_fallthru
      _
    %p23 = scmp.eq.s32.totalorder 0, 0
    // Predicated region
    $region10: #{tpu_custom_call.1} parent=1 // pred_check
      %p24 = pneg %p23
    $region11: #{tpu_custom_call.1} parent=1 // pred_check_branch
      %26 = sbr.rel (%p24) target = $region13
    $region12: #{tpu_custom_call.1} parent=1 // pred_region
      %27 = vst [vmem:[#allocation2] sm:$0xff] 0.0
    $region13: #{tpu_custom_call.1} parent=1 // pred_fallthru
      _
    %v28 = vld [vmem:[#allocation3] sm:$0xff]
    %v29 = vld [vmem:[#allocation3 + $0x8] sm:$0xff]
    %v30 = vadd.f32 %v28, %v29
    %v31 = vld [vmem:[#allocation2] sm:$0xff]
    %v32 = vadd.f32 %v31, %v30
    %33 = vst [vmem:[#allocation2] sm:$0xff] %v32
    // Predicated region
    $region14: #{tpu_custom_call.1} parent=1 // pred_check
      %p34 = pneg %p23
    $region15: #{tpu_custom_call.1} parent=1 // pred_check_branch
      %36 = sbr.rel (%p34) target = $region17
    $region16: #{tpu_custom_call.1} parent=1 // pred_region
      %v37 = vld [vmem:[#allocation2] sm:$0xff]
      %38 = vmatpush.xpose.msra.mxu0 0.0
      %39 = vmatpush.xpose.msra.mxu0 0.0
      %40 = vmatpush.xpose.msra.mxu0 0.0
      %41 = vmatpush.xpose.msra.mxu0 0.0
      %42 = vmatpush.xpose.msra.mxu0 0.0
      %43 = vmatpush.xpose.msra.mxu0 0.0
      %44 = vmatpush.xpose.msra.mxu0 0.0
      %45 = vmatpush.xpose.msra.mxu0 0.0
      %46 = vmatpush.xpose.msra.mxu0 0.0
      %47 = vmatpush.xpose.msra.mxu0 0.0
      %48 = vmatpush.xpose.msra.mxu0 0.0
      %49 = vmatpush.xpose.msra.mxu0 0.0
      %50 = vmatpush.xpose.msra.mxu0 0.0
      %51 = vmatpush.xpose.msra.mxu0 0.0
      %52 = vmatpush.xpose.msra.mxu0 0.0
      %v53 = vand.u32 %v37, 4294901760
      %54 = vmatpush.xpose.msra.mxu0 %v53
      %55 = vmatmul.f32.gmra.mxu0 0.0
      %v56 = vpop.f32.mrf.mxu0
      %v57 = vadd.f32 0.0, %v56
      %58 = vdwg.mxu0
      %59 = vmatpush.xpose.msra.mxu0 0.0
      %60 = vmatpush.xpose.msra.mxu0 0.0
      %61 = vmatpush.xpose.msra.mxu0 0.0
      %62 = vmatpush.xpose.msra.mxu0 0.0
      %63 = vmatpush.xpose.msra.mxu0 0.0
      %64 = vmatpush.xpose.msra.mxu0 0.0
      %65 = vmatpush.xpose.msra.mxu0 0.0
      %66 = vmatpush.xpose.msra.mxu0 0.0
      %67 = vmatpush.xpose.msra.mxu0 0.0
      %68 = vmatpush.xpose.msra.mxu0 0.0
      %69 = vmatpush.xpose.msra.mxu0 0.0
      %70 = vmatpush.xpose.msra.mxu0 0.0
      %71 = vmatpush.xpose.msra.mxu0 0.0
      %72 = vmatpush.xpose.msra.mxu0 0.0
      %73 = vmatpush.xpose.msra.mxu0 0.0
      %v74 = vand.u32 %v37, 4294901760
      %v75 = vsub.f32 %v37, %v74
      %v76 = vand.u32 %v75, 4294901760
      %v77 = vsub.f32 %v75, %v76
      %v78 = vand.u32 %v77, 4294901760
      %79 = vmatpush.xpose.msra.mxu0 %v78
      %80 = vmatmul.f32.gmra.mxu0 1.0
      %v81 = vpop.f32.mrf.mxu0
      %v82 = vadd.f32 %v57, %v81
      %83 = vdwg.mxu0
      %84 = vmatpush.xpose.msra.mxu0 0.0
      %85 = vmatpush.xpose.msra.mxu0 0.0
      %86 = vmatpush.xpose.msra.mxu0 0.0
      %87 = vmatpush.xpose.msra.mxu0 0.0
      %88 = vmatpush.xpose.msra.mxu0 0.0
      %89 = vmatpush.xpose.msra.mxu0 0.0
      %90 = vmatpush.xpose.msra.mxu0 0.0
      %91 = vmatpush.xpose.msra.mxu0 0.0
      %92 = vmatpush.xpose.msra.mxu0 0.0
      %93 = vmatpush.xpose.msra.mxu0 0.0
      %94 = vmatpush.xpose.msra.mxu0 0.0
      %95 = vmatpush.xpose.msra.mxu0 0.0
      %96 = vmatpush.xpose.msra.mxu0 0.0
      %97 = vmatpush.xpose.msra.mxu0 0.0
      %98 = vmatpush.xpose.msra.mxu0 0.0
      %v99 = vand.u32 %v37, 4294901760
      %v100 = vsub.f32 %v37, %v99
      %101 = vmatpush.xpose.msra.mxu0 %v100
      %102 = vmatmul.f32.gmra.mxu0 0.0
      %v103 = vpop.f32.mrf.mxu0
      %v104 = vadd.f32 %v82, %v103
      %105 = vdwg.mxu0
      %106 = vmatpush.xpose.msra.mxu0 0.0
      %107 = vmatpush.xpose.msra.mxu0 0.0
      %108 = vmatpush.xpose.msra.mxu0 0.0
      %109 = vmatpush.xpose.msra.mxu0 0.0
      %110 = vmatpush.xpose.msra.mxu0 0.0
      %111 = vmatpush.xpose.msra.mxu0 0.0
      %112 = vmatpush.xpose.msra.mxu0 0.0
      %113 = vmatpush.xpose.msra.mxu0 0.0
      %114 = vmatpush.xpose.msra.mxu0 0.0
      %115 = vmatpush.xpose.msra.mxu0 0.0
      %116 = vmatpush.xpose.msra.mxu0 0.0
      %117 = vmatpush.xpose.msra.mxu0 0.0
      %118 = vmatpush.xpose.msra.mxu0 0.0
      %119 = vmatpush.xpose.msra.mxu0 0.0
      %120 = vmatpush.xpose.msra.mxu0 0.0
      %v121 = vand.u32 %v37, 4294901760
      %122 = vmatpush.xpose.msra.mxu0 %v121
      %123 = vmatmul.f32.gmra.mxu0 0.0
      %v124 = vpop.f32.mrf.mxu0
      %v125 = vadd.f32 %v104, %v124
      %126 = vdwg.mxu0
      %127 = vmatpush.xpose.msra.mxu0 0.0
      %128 = vmatpush.xpose.msra.mxu0 0.0
      %129 = vmatpush.xpose.msra.mxu0 0.0
      %130 = vmatpush.xpose.msra.mxu0 0.0
      %131 = vmatpush.xpose.msra.mxu0 0.0
      %132 = vmatpush.xpose.msra.mxu0 0.0
      %133 = vmatpush.xpose.msra.mxu0 0.0
      %134 = vmatpush.xpose.msra.mxu0 0.0
      %135 = vmatpush.xpose.msra.mxu0 0.0
      %136 = vmatpush.xpose.msra.mxu0 0.0
      %137 = vmatpush.xpose.msra.mxu0 0.0
      %138 = vmatpush.xpose.msra.mxu0 0.0
      %139 = vmatpush.xpose.msra.mxu0 0.0
      %140 = vmatpush.xpose.msra.mxu0 0.0
      %141 = vmatpush.xpose.msra.mxu0 0.0
      %v142 = vand.u32 %v37, 4294901760
      %v143 = vsub.f32 %v37, %v142
      %v144 = vand.u32 %v143, 4294901760
      %145 = vmatpush.xpose.msra.mxu0 %v144
      %146 = vmatmul.f32.gmra.mxu0 1.0
      %v147 = vpop.f32.mrf.mxu0
      %v148 = vadd.f32 %v125, %v147
      %149 = vdwg.mxu0
      %150 = vmatpush.xpose.msra.mxu0 0.0
      %151 = vmatpush.xpose.msra.mxu0 0.0
      %152 = vmatpush.xpose.msra.mxu0 0.0
      %153 = vmatpush.xpose.msra.mxu0 0.0
      %154 = vmatpush.xpose.msra.mxu0 0.0
      %155 = vmatpush.xpose.msra.mxu0 0.0
      %156 = vmatpush.xpose.msra.mxu0 0.0
      %157 = vmatpush.xpose.msra.mxu0 0.0
      %158 = vmatpush.xpose.msra.mxu0 0.0
      %159 = vmatpush.xpose.msra.mxu0 0.0
      %160 = vmatpush.xpose.msra.mxu0 0.0
      %161 = vmatpush.xpose.msra.mxu0 0.0
      %162 = vmatpush.xpose.msra.mxu0 0.0
      %163 = vmatpush.xpose.msra.mxu0 0.0
      %164 = vmatpush.xpose.msra.mxu0 0.0
      %v165 = vand.u32 %v37, 4294901760
      %166 = vmatpush.xpose.msra.mxu0 %v165
      %167 = vmatmul.f32.gmra.mxu0 1.0
      %v168 = vpop.f32.mrf.mxu0
      %v169 = vadd.f32 %v148, %v168
      %170 = vdwg.mxu0
      %v171 = vmul.f32 %v169, 0.00390625
      %vm172 = vcmask 57344
      %173 = vst.msk [vmem:[#allocation6] sm:$0x1] %vm172, %v171
    $region17: #{tpu_custom_call.1} parent=1 // pred_fallthru
      _
    // Predicated region
    $region18: #{tpu_custom_call.1} parent=1 // pred_check
      _
    $region19: #{tpu_custom_call.1} parent=1 // pred_check_branch
      %175 = sbr.rel (0) target = $region21
    $region20: #{tpu_custom_call.1} parent=1 // pred_region
      %177 = vsyncadd [#allocation5], 0
      %s179 = sshll.u32 [#allocation6], 4
      %s180 = int_to_ptr.vmem [resolvable:$true] %s179
      %s181 = sshll.u32 %s1, 4
      %s182 = int_to_ptr.hbm [resolvable:$true] %s181
      %184 = dma.vmem_to_hbm [thread:$0]  %s180, 16, %s182, [#allocation5]
    $region21: #{tpu_custom_call.1} parent=1 // pred_fallthru
      _
    // Predicated region
    $region22: #{tpu_custom_call.1} parent=1 // pred_check
      _
    $region23: #{tpu_custom_call.1} parent=1 // pred_check_branch
      %186 = sbr.rel (0) target = $region25
    $region24: #{tpu_custom_call.1} parent=1 // pred_region
      %188 = dma.done [#allocation5], 16
    $region25: #{tpu_custom_call.1} parent=1 // pred_fallthru
      _
    %189 = vsyncpa [#allocation4], 1
    %190 = vsyncpa [#allocation5], 1

</llo_original>
